<compile_context>
chip_gen: v7x
topology: tpu7x:2x2x1
jax: 0.10.0
libtpu: 0.0.40
codegen_flags: <defaults>
</compile_context>

<pallas_src>
import functools

import jax
import jax.numpy as jnp
from jax.experimental import pallas as pl
from jax.experimental.pallas import tpu as pltpu


# ----------------------------------------------------------------------------- kernel

def mlp_kernel(xt_ref, w1_ref, b1_ref, w2_ref, b2_ref, o_ref):
    # --- lin1 + ReLU:  (H, F)bf16 @ (F, TN)bf16 -> (H, TN)f32  (single MXU pass) ---
    h = jnp.dot(w1_ref[...], xt_ref[...], preferred_element_type=jnp.float32)
    h = jnp.maximum(h + b1_ref[...], 0.0)          # (H, TN) + (H, 1), f32

    # --- lin2:  (C, H)bf16 @ (H, TN)bf16 -> (C, TN)f32  (single MXU pass) ---
    logits = jnp.dot(w2_ref[...], h.astype(jnp.bfloat16),
                     preferred_element_type=jnp.float32)
    logits = logits + b2_ref[...]                  # (C, TN) + (C, 1), f32

    # --- log_softmax over the class axis (axis 0 = sublanes), f32 throughout ---
    m = jnp.max(logits, axis=0, keepdims=True)     # (1, TN)
    s = logits - m
    lse = jnp.log(jnp.sum(jnp.exp(s), axis=0, keepdims=True))
    o_ref[...] = (s - lse).astype(o_ref.dtype)     # lane-dense (C, TN) store


# ------------------------------------------------------------------- tiling heuristics

_TILE_CANDIDATES = (16384, 8192, 4096, 2048, 1024, 512, 256, 128)


def _num_tensorcores():
    """Best-effort TensorCore count per device (defensive: falls back to 1)."""
    try:
        d = jax.devices()[0]
        for attr in ("num_cores", "core_count"):
            v = getattr(d, attr, None)
            if isinstance(v, int) and v > 0:
                return v
        kind = str(getattr(d, "device_kind", "")).lower()
        # Chips exposing 2 TensorCores behind one device (megacore-style).
        if any(tag in kind for tag in ("v4", "v5p", "v7")):
            return 2
    except Exception:
        pass
    return 1


def _pick_tile(n, num_cores):
    """Largest tile that still leaves >= 2*num_cores grid steps on multi-core chips;
    on single-core chips, prefer ONE step (per-step overhead dominates this kernel)."""
    min_steps = 2 * num_cores if num_cores > 1 else 1
    for cand in _TILE_CANDIDATES:
        if n >= min_steps * cand:
            return cand
    return 128


def _vmem_estimate_bytes(f, h, c, tile_n):
    # Double-buffered streaming tiles + (double-buffered, tiny) resident weights.
    per_step = f * tile_n * 2 + c * tile_n * 4          # bf16 x^T in + f32 out
    resident = h * f * 2 + h * 4 + c * h * 2 + c * 4
    return 2 * per_step + 2 * resident


# ------------------------------------------------------------------------- entry points

def mlp_forward_feature_major(xt, w1, b1, w2, b2, *, tile_n=None,
                              out_dtype=jnp.float32):
    """Core entry point (no layout plumbing).

    xt: [F, N] feature-major input (bf16 preferred; cast if not).
    Torch-layout params: w1 [H, F], b1 [H], w2 [C, H], b2 [C].
    Returns log-probs feature-major: [C, N].
    """
    F, N = xt.shape
    H, F2 = w1.shape
    C, H2 = w2.shape
    assert F2 == F and H2 == H

    xt = xt.astype(jnp.bfloat16)
    w1b = w1.astype(jnp.bfloat16)                    # (H, F)   resident
    b1c = b1.reshape(H, 1).astype(jnp.float32)       # (H, 1)
    w2b = w2.astype(jnp.bfloat16)                    # (C, H)   resident (bf16 MXU pass)
    b2c = b2.reshape(C, 1).astype(jnp.float32)       # (C, 1)

    # Only pad for very small N (block last dim must be a multiple of 128).
    n_run = N
    if N < 128:
        xt = jnp.pad(xt, ((0, 0), (0, 128 - N)))
        n_run = 128

    num_cores = _num_tensorcores()
    if tile_n is None:
        tile_n = _pick_tile(n_run, num_cores)

    grid = (pl.cdiv(n_run, tile_n),)                 # ragged last block is masked

    cp_kwargs = dict(dimension_semantics=("parallel",))
    est = _vmem_estimate_bytes(F, H, C, tile_n)
    if est > 12 * 1024 * 1024:                       # only raise when we'd hit the
        cp_kwargs["vmem_limit_bytes"] = min(2 * est, 64 * 1024 * 1024)  # default limit

    out_t = pl.pallas_call(
        mlp_kernel,
        out_shape=jax.ShapeDtypeStruct((C, n_run), out_dtype),
        grid_spec=pltpu.PrefetchScalarGridSpec(
            num_scalar_prefetch=0,
            grid=grid,
            in_specs=[
                pl.BlockSpec((F, tile_n), lambda i: (0, i)),  # x^T tile (lane-dense)
                pl.BlockSpec((H, F), lambda i: (0, 0)),       # w1 (resident)
                pl.BlockSpec((H, 1), lambda i: (0, 0)),       # b1
                pl.BlockSpec((C, H), lambda i: (0, 0)),       # w2 (resident)
                pl.BlockSpec((C, 1), lambda i: (0, 0)),       # b2
            ],
            out_specs=pl.BlockSpec((C, tile_n), lambda i: (0, i)),
        ),
        compiler_params=pltpu.CompilerParams(**cp_kwargs),
    )(xt, w1b, b1c, w2b, b2c)

    if n_run != N:
        out_t = out_t[:, :N]
    return out_t                                      # (C, N)


def mlp_forward(x, w1, b1, w2, b2, *, tile_n=None, out_dtype=jnp.float32):
    """PyTorch-layout wrapper.  x: [N, F] float32.  Returns [N, C] log-probs.

    If the caller can produce x feature-major / consume (C, N) log-probs directly
    (e.g. argmax / NLL gather on the class axis), call mlp_forward_feature_major
    instead and skip both transpose passes.
    """
    xt = x.T.astype(jnp.bfloat16)                     # single fused transpose+cast pass
    out_t = mlp_forward_feature_major(xt, w1, b1, w2, b2,
                                      tile_n=tile_n, out_dtype=out_dtype)
    return out_t.T                                    # back to (N, C)


# -------------------------------------------------------------------------- references

def reference_forward_matched(x, w1, b1, w2, b2):
    # Mirrors the kernel numerics: bf16 operands on both matmuls, f32 accumulation,
    # f32 bias/ReLU/log_softmax.
    h = jnp.dot(x.astype(jnp.bfloat16), w1.T.astype(jnp.bfloat16),
                preferred_element_type=jnp.float32) + b1[None, :]
    h = jnp.maximum(h, 0.0)
    logits = jnp.dot(h.astype(jnp.bfloat16), w2.T.astype(jnp.bfloat16),
                     preferred_element_type=jnp.float32) + b2[None, :]
    return jax.nn.log_softmax(logits, axis=1)


def reference_forward_f32(x, w1, b1, w2, b2):
    # True f32 PyTorch-MLP numerics (loose-tolerance parity check).
    h = jnp.maximum(x @ w1.T + b1[None, :], 0.0)
    logits = h @ w2.T + b2[None, :]
    return jax.nn.log_softmax(logits, axis=1)


# --------------------------------------------------------------------------------- main

if __name__ == "__main__":
    # Shapes consistent with the module:
    #   dataset.num_features = 16, args.hidden = 32, dataset.num_classes = 8
    #   N = 1024 nodes.
    N, F, H, C = 1024, 16, 32, 8

    key = jax.random.PRNGKey(0)
    kx, k1, kb1, k2, kb2 = jax.random.split(key, 5)

    x = jax.random.normal(kx, (N, F), dtype=jnp.float32)

    # Deterministic Linear-style init (uniform in +/- 1/sqrt(fan_in)), torch layout.
    bound1 = 1.0 / (F ** 0.5)
    w1 = jax.random.uniform(k1, (H, F), minval=-bound1, maxval=bound1, dtype=jnp.float32)
    b1 = jax.random.uniform(kb1, (H,), minval=-bound1, maxval=bound1, dtype=jnp.float32)
    bound2 = 1.0 / (H ** 0.5)
    w2 = jax.random.uniform(k2, (C, H), minval=-bound2, maxval=bound2, dtype=jnp.float32)
    b2 = jax.random.uniform(kb2, (C,), minval=-bound2, maxval=bound2, dtype=jnp.float32)

    out = mlp_forward(x, w1, b1, w2, b2)
    out = jax.block_until_ready(out)
    assert out.shape == (N, C)

    # Tight check against a reference that mirrors the kernel's bf16/f32 numerics.
    ref_m = reference_forward_matched(x, w1, b1, w2, b2)
    assert jnp.allclose(out, ref_m, atol=1e-3, rtol=1e-3), "mismatch vs matched reference"

    # Loose-tolerance parity check against the true f32 PyTorch-MLP numerics
    # (bf16 input/weight streaming introduces ~1e-2-level logit error).
    ref_f = reference_forward_f32(x, w1, b1, w2, b2)
    assert jnp.allclose(out, ref_f, atol=1.5e-1, rtol=0.0), "mismatch vs f32 reference"

    print("KERNEL_OK")
</pallas_src>

<mosaic_0001>
module attributes {stable_mosaic.version = 11 : i64} {
  func.func @mlp_kernel(%arg0: i32, %arg1: memref<16x1024xbf16, #tpu.memory_space<vmem>>, %arg2: memref<32x16xbf16, #tpu.memory_space<vmem>>, %arg3: memref<32x1xf32, #tpu.memory_space<vmem>>, %arg4: memref<8x32xbf16, #tpu.memory_space<vmem>>, %arg5: memref<8x1xf32, #tpu.memory_space<vmem>>, %arg6: memref<8x1024xf32, #tpu.memory_space<vmem>>) attributes {dimension_semantics = [#tpu.dimension_semantics<parallel>], iteration_bounds = array<i64: 1>, scalar_prefetch = 0 : i64, scratch_operands = 0 : i64, tpu.core_type = #tpu.core_type<tc>, window_params = [{transform_indices = @transform_0, window_bounds = array<i64: 16, 1024>}, {pipeline_mode = #tpu.pipeline_mode<synchronous>, transform_indices = @transform_1, window_bounds = array<i64: 32, 16>}, {pipeline_mode = #tpu.pipeline_mode<synchronous>, transform_indices = @transform_2, window_bounds = array<i64: 32, 1>}, {pipeline_mode = #tpu.pipeline_mode<synchronous>, transform_indices = @transform_3, window_bounds = array<i64: 8, 32>}, {pipeline_mode = #tpu.pipeline_mode<synchronous>, transform_indices = @transform_4, window_bounds = array<i64: 8, 1>}, {transform_indices = @transform_5, window_bounds = array<i64: 8, 1024>}]} {
    %c0 = arith.constant 0 : index
    %c0_0 = arith.constant 0 : index
    %0 = vector.load %arg2[%c0, %c0_0] : memref<32x16xbf16, #tpu.memory_space<vmem>>, vector<32x16xbf16>
    %c0_1 = arith.constant 0 : index
    %c0_2 = arith.constant 0 : index
    %1 = vector.load %arg1[%c0_1, %c0_2] : memref<16x1024xbf16, #tpu.memory_space<vmem>>, vector<16x1024xbf16>
    %cst = arith.constant dense<0.000000e+00> : vector<32x1024xf32>
    %2 = tpu.matmul %0, %1, %cst {dimension_numbers = #tpu.dot_dimension_numbers<[1], [0], [0], [1], [0, 0, 1, 1], [], []>} : vector<32x16xbf16>, vector<16x1024xbf16>, vector<32x1024xf32> -> vector<32x1024xf32>
    %c0_3 = arith.constant 0 : index
    %c0_4 = arith.constant 0 : index
    %3 = vector.load %arg3[%c0_3, %c0_4] : memref<32x1xf32, #tpu.memory_space<vmem>>, vector<32x1xf32>
    %4 = vector.broadcast %3 : vector<32x1xf32> to vector<32x1024xf32>
    %5 = arith.addf %2, %4 : vector<32x1024xf32>
    %cst_5 = arith.constant 0.000000e+00 : f32
    %6 = vector.broadcast %cst_5 : f32 to vector<32x1024xf32>
    %7 = arith.maximumf %5, %6 : vector<32x1024xf32>
    %c0_6 = arith.constant 0 : index
    %c0_7 = arith.constant 0 : index
    %8 = vector.load %arg4[%c0_6, %c0_7] : memref<8x32xbf16, #tpu.memory_space<vmem>>, vector<8x32xbf16>
    %9 = arith.truncf %7 : vector<32x1024xf32> to vector<32x1024xbf16>
    %cst_8 = arith.constant dense<0.000000e+00> : vector<8x1024xf32>
    %10 = tpu.matmul %8, %9, %cst_8 {dimension_numbers = #tpu.dot_dimension_numbers<[1], [0], [0], [1], [0, 0, 1, 1], [], []>} : vector<8x32xbf16>, vector<32x1024xbf16>, vector<8x1024xf32> -> vector<8x1024xf32>
    %c0_9 = arith.constant 0 : index
    %c0_10 = arith.constant 0 : index
    %11 = vector.load %arg5[%c0_9, %c0_10] : memref<8x1xf32, #tpu.memory_space<vmem>>, vector<8x1xf32>
    %12 = vector.broadcast %11 : vector<8x1xf32> to vector<8x1024xf32>
    %13 = arith.addf %10, %12 : vector<8x1024xf32>
    %cst_11 = arith.constant dense<0xFF800000> : vector<1024xf32>
    %14 = vector.multi_reduction <maximumf>, %13, %cst_11 [0] : vector<8x1024xf32> to vector<1024xf32>
    %15 = vector.shape_cast %14 : vector<1024xf32> to vector<1x1024xf32>
    %16 = vector.broadcast %15 : vector<1x1024xf32> to vector<8x1024xf32>
    %17 = arith.subf %13, %16 : vector<8x1024xf32>
    %18 = math.exp %17 : vector<8x1024xf32>
    %cst_12 = arith.constant dense<0.000000e+00> : vector<1024xf32>
    %19 = vector.multi_reduction <add>, %18, %cst_12 [0] : vector<8x1024xf32> to vector<1024xf32>
    %20 = vector.shape_cast %19 : vector<1024xf32> to vector<1x1024xf32>
    %21 = math.log %20 : vector<1x1024xf32>
    %22 = vector.broadcast %21 : vector<1x1024xf32> to vector<8x1024xf32>
    %23 = arith.subf %17, %22 : vector<8x1024xf32>
    %c0_13 = arith.constant 0 : index
    %c0_14 = arith.constant 0 : index
    %24 = vector.load %arg6[%c0_13, %c0_14] : memref<8x1024xf32, #tpu.memory_space<vmem>>, vector<8x1024xf32>
    tpu.vector_store %arg6[%c0_13, %c0_14], %23 {strides = array<i32>} : memref<8x1024xf32, #tpu.memory_space<vmem>>, vector<8x1024xf32>,
    return
  }
  func.func @transform_0(%arg0: i32) -> (i32, i32) {
    %c0_i32 = arith.constant 0 : i32
    %c0_i32_0 = arith.constant 0 : i32
    return %c0_i32, %arg0 : i32, i32
  }
  func.func @transform_1(%arg0: i32) -> (i32, i32) {
    %c0_i32 = arith.constant 0 : i32
    %c0_i32_0 = arith.constant 0 : i32
    %c0_i32_1 = arith.constant 0 : i32
    return %c0_i32, %c0_i32_0 : i32, i32
  }
  func.func @transform_2(%arg0: i32) -> (i32, i32) {
    %c0_i32 = arith.constant 0 : i32
    %c0_i32_0 = arith.constant 0 : i32
    %c0_i32_1 = arith.constant 0 : i32
    return %c0_i32, %c0_i32_0 : i32, i32
  }
  func.func @transform_3(%arg0: i32) -> (i32, i32) {
    %c0_i32 = arith.constant 0 : i32
    %c0_i32_0 = arith.constant 0 : i32
    %c0_i32_1 = arith.constant 0 : i32
    return %c0_i32, %c0_i32_0 : i32, i32
  }
  func.func @transform_4(%arg0: i32) -> (i32, i32) {
    %c0_i32 = arith.constant 0 : i32
    %c0_i32_0 = arith.constant 0 : i32
    %c0_i32_1 = arith.constant 0 : i32
    return %c0_i32, %c0_i32_0 : i32, i32
  }
  func.func @transform_5(%arg0: i32) -> (i32, i32) {
    %c0_i32 = arith.constant 0 : i32
    %c0_i32_0 = arith.constant 0 : i32
    return %c0_i32, %arg0 : i32, i32
  }
}

</mosaic_0001>

<llo_original>
// kernel: tpu_custom_call.1
$region0: #{tpu_custom_call.1}
  #allocation0 [shape = 'u32[]', space=smem, size = 0x4, offset = 0x4, fixed_abs, tag = 'smem constant byte address 0x4 - core index']
  #allocation1 [shape = 'u32[144,128]{1,0:T(1,128)}', space=vmem, size = 0x12000, scoped, tag = 'internal scratch']
  %s0 = inlined_call_operand.vmem [shape: bf16[16,1024], index: 0, kind: input, shape index: {}]
  %s1 = inlined_call_operand.vmem [shape: bf16[32,16], index: 1, kind: input, shape index: {}]
  %s2 = inlined_call_operand.vmem [shape: f32[32,1], index: 2, kind: input, shape index: {}]
  %s3 = inlined_call_operand.vmem [shape: bf16[8,32], index: 3, kind: input, shape index: {}]
  %s4 = inlined_call_operand.vmem [shape: f32[8,1], index: 4, kind: input, shape index: {}]
  %s5 = inlined_call_operand.hbm [shape: f32[8,1024], index: 5, kind: output, shape index: {}]
  %s6 = sld [smem:[#allocation0]]
  $region30: #{tpu_custom_call.1} parent=0
    _
  %s8 = ssub.s32 1, %s6
  %s9 = scalar_select 0, %s8, %s6
  $region1: #{tpu_custom_call.1} parent=0
    #allocation2 [shape = 'u8[32768]{0}', space=vmem, size = 0x8000, scoped, tag = 'output window, operand 0, single buffered']
    #allocation3 [shape = 's32[1]{0}', space=sflag, size = 0x4, scoped, tag = 'scoped memory for tpu_custom_call.1']
    %10 = vsyncpa [#allocation3], 0
    // Predicated region
    $region2: #{tpu_custom_call.1} parent=1 // pred_check
      _
    $region3: #{tpu_custom_call.1} parent=1 // pred_check_branch
      %12 = sbr.rel (0) target = $region5
    $region4: #{tpu_custom_call.1} parent=1 // pred_region
      _
    $region5: #{tpu_custom_call.1} parent=1 // pred_fallthru
      _
    // Predicated region
    $region6: #{tpu_custom_call.1} parent=1 // pred_check
      _
    $region7: #{tpu_custom_call.1} parent=1 // pred_check_branch
      %14 = sbr.rel (0) target = $region9
    $region8: #{tpu_custom_call.1} parent=1 // pred_region
      _
    $region9: #{tpu_custom_call.1} parent=1 // pred_fallthru
      _
    // Predicated region
    $region10: #{tpu_custom_call.1} parent=1 // pred_check
      _
    $region11: #{tpu_custom_call.1} parent=1 // pred_check_branch
      %16 = sbr.rel (0) target = $region13
    $region12: #{tpu_custom_call.1} parent=1 // pred_region
      _
    $region13: #{tpu_custom_call.1} parent=1 // pred_fallthru
      _
    // Predicated region
    $region14: #{tpu_custom_call.1} parent=1 // pred_check
      _
    $region15: #{tpu_custom_call.1} parent=1 // pred_check_branch
      %18 = sbr.rel (0) target = $region17
    $region16: #{tpu_custom_call.1} parent=1 // pred_region
      _
    $region17: #{tpu_custom_call.1} parent=1 // pred_fallthru
      _
    // Predicated region
    $region18: #{tpu_custom_call.1} parent=1 // pred_check
      _
    $region19: #{tpu_custom_call.1} parent=1 // pred_check_branch
      %20 = sbr.rel (0) target = $region21
    $region20: #{tpu_custom_call.1} parent=1 // pred_region
      _
    $region21: #{tpu_custom_call.1} parent=1 // pred_fallthru
      _
    %v22 = vld [vmem:[%s1] sm:$0xf]
    %v23 = vld [vmem:[%s1 + $0x4] sm:$0xf]
    %v24 = vld [vmem:[%s1 + $0x8] sm:$0xf]
    %v25 = vld [vmem:[%s1 + $0xc] sm:$0xf]
    %v26 = vld [vmem:[%s0] sm:$0xff]
    %v27 = vld [vmem:[%s0 + $0x8] sm:$0xff]
    %v28 = vld [vmem:[%s0 + $0x10] sm:$0xff]
    %v29 = vld [vmem:[%s0 + $0x18] sm:$0xff]
    %v30 = vld [vmem:[%s0 + $0x20] sm:$0xff]
    %v31 = vld [vmem:[%s0 + $0x28] sm:$0xff]
    %v32 = vld [vmem:[%s0 + $0x30] sm:$0xff]
    %v33 = vld [vmem:[%s0 + $0x38] sm:$0xff]
    %v34 = vld [vmem:[%s2] sm:$0xff]
    %v35 = vld [vmem:[%s2 + $0x8] sm:$0xff]
    %v36 = vld [vmem:[%s2 + $0x10] sm:$0xff]
    %v37 = vld [vmem:[%s2 + $0x18] sm:$0xff]
    %39 = vset.pattern.permute.xlu0 0
    %40 = vperm.xlu0 %39, %v34
    %v41 = vpop.permute.xlu0 %40
    %44 = vset.pattern.permute.xlu0 0
    %45 = vperm.xlu0 %44, %v35
    %v46 = vpop.permute.xlu0 %45
    %49 = vset.pattern.permute.xlu0 0
    %50 = vperm.xlu0 %49, %v36
    %v51 = vpop.permute.xlu0 %50
    %54 = vset.pattern.permute.xlu0 0
    %55 = vperm.xlu0 %54, %v37
    %v56 = vpop.permute.xlu0 %55
    %v62 = vunpack.c.l.b16 %v22
    %v63 = vunpack.c.l.b16 %v23
    %v64 = vunpack.c.l.b16 %v24
    %v65 = vunpack.c.l.b16 %v25
    %v66 = vpack.c.b16 %v63, %v62
    %v67 = vpack.c.b16 %v65, %v64
    %v76 = vunpack.c.l.b16 %v26
    %v77 = vunpack.c.h.b16 %v26
    %v78 = vunpack.c.l.b16 %v27
    %v79 = vunpack.c.h.b16 %v27
    %v80 = vunpack.c.l.b16 %v28
    %v81 = vunpack.c.h.b16 %v28
    %v82 = vunpack.c.l.b16 %v29
    %v83 = vunpack.c.h.b16 %v29
    %v84 = vunpack.c.l.b16 %v30
    %v85 = vunpack.c.h.b16 %v30
    %v86 = vunpack.c.l.b16 %v31
    %v87 = vunpack.c.h.b16 %v31
    %v88 = vunpack.c.l.b16 %v32
    %v89 = vunpack.c.h.b16 %v32
    %v90 = vunpack.c.l.b16 %v33
    %v91 = vunpack.c.h.b16 %v33
    %v92 = vpack.c.b16 %v84, %v76
    %v93 = vpack.c.b16 %v85, %v77
    %v94 = vpack.c.b16 %v86, %v78
    %v95 = vpack.c.b16 %v87, %v79
    %v96 = vpack.c.b16 %v88, %v80
    %v97 = vpack.c.b16 %v89, %v81
    %v98 = vpack.c.b16 %v90, %v82
    %v99 = vpack.c.b16 %v91, %v83
    %vm108 = vcmask 130048
    %v110 = vsel %vm108, %v66, 0
    %v113 = vsel %vm108, %v67, 0
    %115 = vmatprep.subr.bf16.mxu0 %v93
    %116 = vmatpush1.bf16.msra.mxu0 %v92
    %117 = vmatprep.subr.bf16.mxu0 0
    %118 = vmatpush1.bf16.msra.mxu0 0
    %119 = vmatprep.subr.bf16.mxu0 0
    %120 = vmatpush1.bf16.msra.mxu0 0
    %121 = vmatprep.subr.bf16.mxu0 0
    %122 = vmatpush1.bf16.msra.mxu0 0
    %123 = vmatprep.subr.bf16.mxu0 0
    %124 = vmatpush1.bf16.msra.mxu0 0
    %125 = vmatprep.subr.bf16.mxu0 0
    %126 = vmatpush1.bf16.msra.mxu0 0
    %127 = vmatprep.subr.bf16.mxu0 0
    %128 = vmatpush1.bf16.msra.mxu0 0
    %129 = vmatprep.subr.bf16.mxu0 0
    %130 = vmatpush1.bf16.msra.mxu0 0
    %131 = vmatprep.subr.bf16.mxu0 0
    %132 = vmatpush1.bf16.msra.mxu0 0
    %133 = vmatprep.subr.bf16.mxu0 0
    %134 = vmatpush1.bf16.msra.mxu0 0
    %135 = vmatprep.subr.bf16.mxu0 0
    %136 = vmatpush1.bf16.msra.mxu0 0
    %137 = vmatprep.subr.bf16.mxu0 0
    %138 = vmatpush1.bf16.msra.mxu0 0
    %139 = vmatprep.subr.bf16.mxu0 0
    %140 = vmatpush1.bf16.msra.mxu0 0
    %141 = vmatprep.subr.bf16.mxu0 0
    %142 = vmatpush1.bf16.msra.mxu0 0
    %143 = vmatprep.subr.bf16.mxu0 0
    %144 = vmatpush1.bf16.msra.mxu0 0
    %145 = vmatprep.subr.bf16.mxu0 0
    %146 = vmatpush1.bf16.msra.mxu0 0
    %147 = vmatprep.mubr.bf16.mxu0 0
    %148 = vmatmul.mubr.bf16.gmra.mrb[0].mxu0 %v110
    %v149 = vpop.f32.mrb[0].mxu0
    %v150 = vadd.f32 %v41, %v149
    %v151 = vpop.f32.mrb[0].mxu0
    %v152 = vadd.f32 %v41, %v151
    %v153 = vpop.f32.mrb[0].mxu0
    %v154 = vadd.f32 %v46, %v153
    %v155 = vpop.f32.mrb[0].mxu0
    %v156 = vadd.f32 %v46, %v155
    %157 = vmatprep.mubr.bf16.mxu0 0
    %158 = vmatmul.mubr.bf16.gmra.mrb[0].mxu0 %v113
    %v159 = vpop.f32.mrb[0].mxu0
    %v160 = vadd.f32 %v51, %v159
    %v161 = vpop.f32.mrb[0].mxu0
    %v162 = vadd.f32 %v51, %v161
    %v163 = vpop.f32.mrb[0].mxu0
    %v164 = vadd.f32 %v56, %v163
    %v165 = vpop.f32.mrb[0].mxu0
    %v166 = vadd.f32 %v56, %v165
    %167 = vdwg.mxu0
    %168 = vmatprep.subr.bf16.mxu0 %v95
    %169 = vmatpush1.bf16.msra.mxu0 %v94
    %170 = vmatprep.subr.bf16.mxu0 0
    %171 = vmatpush1.bf16.msra.mxu0 0
    %172 = vmatprep.subr.bf16.mxu0 0
    %173 = vmatpush1.bf16.msra.mxu0 0
    %174 = vmatprep.subr.bf16.mxu0 0
    %175 = vmatpush1.bf16.msra.mxu0 0
    %176 = vmatprep.subr.bf16.mxu0 0
    %177 = vmatpush1.bf16.msra.mxu0 0
    %178 = vmatprep.subr.bf16.mxu0 0
    %179 = vmatpush1.bf16.msra.mxu0 0
    %180 = vmatprep.subr.bf16.mxu0 0
    %181 = vmatpush1.bf16.msra.mxu0 0
    %182 = vmatprep.subr.bf16.mxu0 0
    %183 = vmatpush1.bf16.msra.mxu0 0
    %184 = vmatprep.subr.bf16.mxu0 0
    %185 = vmatpush1.bf16.msra.mxu0 0
    %186 = vmatprep.subr.bf16.mxu0 0
    %187 = vmatpush1.bf16.msra.mxu0 0
    %188 = vmatprep.subr.bf16.mxu0 0
    %189 = vmatpush1.bf16.msra.mxu0 0
    %190 = vmatprep.subr.bf16.mxu0 0
    %191 = vmatpush1.bf16.msra.mxu0 0
    %192 = vmatprep.subr.bf16.mxu0 0
    %193 = vmatpush1.bf16.msra.mxu0 0
    %194 = vmatprep.subr.bf16.mxu0 0
    %195 = vmatpush1.bf16.msra.mxu0 0
    %196 = vmatprep.subr.bf16.mxu0 0
    %197 = vmatpush1.bf16.msra.mxu0 0
    %198 = vmatprep.subr.bf16.mxu0 0
    %199 = vmatpush1.bf16.msra.mxu0 0
    %200 = vmatprep.mubr.bf16.mxu0 0
    %201 = vmatmul.mubr.bf16.gmra.mrb[0].mxu0 %v110
    %v202 = vpop.f32.mrb[0].mxu0
    %v203 = vadd.f32 %v41, %v202
    %v204 = vpop.f32.mrb[0].mxu0
    %v205 = vadd.f32 %v41, %v204
    %v206 = vpop.f32.mrb[0].mxu0
    %v207 = vadd.f32 %v46, %v206
    %v208 = vpop.f32.mrb[0].mxu0
    %v209 = vadd.f32 %v46, %v208
    %210 = vmatprep.mubr.bf16.mxu0 0
    %211 = vmatmul.mubr.bf16.gmra.mrb[0].mxu0 %v113
    %v212 = vpop.f32.mrb[0].mxu0
    %v213 = vadd.f32 %v51, %v212
    %v214 = vpop.f32.mrb[0].mxu0
    %v215 = vadd.f32 %v51, %v214
    %v216 = vpop.f32.mrb[0].mxu0
    %v217 = vadd.f32 %v56, %v216
    %v218 = vpop.f32.mrb[0].mxu0
    %v219 = vadd.f32 %v56, %v218
    %220 = vdwg.mxu0
    %221 = vmatprep.subr.bf16.mxu0 %v97
    %222 = vmatpush1.bf16.msra.mxu0 %v96
    %223 = vmatprep.subr.bf16.mxu0 0
    %224 = vmatpush1.bf16.msra.mxu0 0
    %225 = vmatprep.subr.bf16.mxu0 0
    %226 = vmatpush1.bf16.msra.mxu0 0
    %227 = vmatprep.subr.bf16.mxu0 0
    %228 = vmatpush1.bf16.msra.mxu0 0
    %229 = vmatprep.subr.bf16.mxu0 0
    %230 = vmatpush1.bf16.msra.mxu0 0
    %231 = vmatprep.subr.bf16.mxu0 0
    %232 = vmatpush1.bf16.msra.mxu0 0
    %233 = vmatprep.subr.bf16.mxu0 0
    %234 = vmatpush1.bf16.msra.mxu0 0
    %235 = vmatprep.subr.bf16.mxu0 0
    %236 = vmatpush1.bf16.msra.mxu0 0
    %237 = vmatprep.subr.bf16.mxu0 0
    %238 = vmatpush1.bf16.msra.mxu0 0
    %239 = vmatprep.subr.bf16.mxu0 0
    %240 = vmatpush1.bf16.msra.mxu0 0
    %241 = vmatprep.subr.bf16.mxu0 0
    %242 = vmatpush1.bf16.msra.mxu0 0
    %243 = vmatprep.subr.bf16.mxu0 0
    %244 = vmatpush1.bf16.msra.mxu0 0
    %245 = vmatprep.subr.bf16.mxu0 0
    %246 = vmatpush1.bf16.msra.mxu0 0
    %247 = vmatprep.subr.bf16.mxu0 0
    %248 = vmatpush1.bf16.msra.mxu0 0
    %249 = vmatprep.subr.bf16.mxu0 0
    %250 = vmatpush1.bf16.msra.mxu0 0
    %251 = vmatprep.subr.bf16.mxu0 0
    %252 = vmatpush1.bf16.msra.mxu0 0
    %253 = vmatprep.mubr.bf16.mxu0 0
    %254 = vmatmul.mubr.bf16.gmra.mrb[0].mxu0 %v110
    %v255 = vpop.f32.mrb[0].mxu0
    %v256 = vadd.f32 %v41, %v255
    %v257 = vpop.f32.mrb[0].mxu0
    %v258 = vadd.f32 %v41, %v257
    %v259 = vpop.f32.mrb[0].mxu0
    %v260 = vadd.f32 %v46, %v259
    %v261 = vpop.f32.mrb[0].mxu0
    %v262 = vadd.f32 %v46, %v261
    %263 = vmatprep.mubr.bf16.mxu0 0
    %264 = vmatmul.mubr.bf16.gmra.mrb[0].mxu0 %v113
    %v265 = vpop.f32.mrb[0].mxu0
    %v266 = vadd.f32 %v51, %v265
    %v267 = vpop.f32.mrb[0].mxu0
    %v268 = vadd.f32 %v51, %v267
    %v269 = vpop.f32.mrb[0].mxu0
    %v270 = vadd.f32 %v56, %v269
    %v271 = vpop.f32.mrb[0].mxu0
    %v272 = vadd.f32 %v56, %v271
    %273 = vdwg.mxu0
    %274 = vmatprep.subr.bf16.mxu0 %v99
    %275 = vmatpush1.bf16.msra.mxu0 %v98
    %276 = vmatprep.subr.bf16.mxu0 0
    %277 = vmatpush1.bf16.msra.mxu0 0
    %278 = vmatprep.subr.bf16.mxu0 0
    %279 = vmatpush1.bf16.msra.mxu0 0
    %280 = vmatprep.subr.bf16.mxu0 0
    %281 = vmatpush1.bf16.msra.mxu0 0
    %282 = vmatprep.subr.bf16.mxu0 0
    %283 = vmatpush1.bf16.msra.mxu0 0
    %284 = vmatprep.subr.bf16.mxu0 0
    %285 = vmatpush1.bf16.msra.mxu0 0
    %286 = vmatprep.subr.bf16.mxu0 0
    %287 = vmatpush1.bf16.msra.mxu0 0
    %288 = vmatprep.subr.bf16.mxu0 0
    %289 = vmatpush1.bf16.msra.mxu0 0
    %290 = vmatprep.subr.bf16.mxu0 0
    %291 = vmatpush1.bf16.msra.mxu0 0
    %292 = vmatprep.subr.bf16.mxu0 0
    %293 = vmatpush1.bf16.msra.mxu0 0
    %294 = vmatprep.subr.bf16.mxu0 0
    %295 = vmatpush1.bf16.msra.mxu0 0
    %296 = vmatprep.subr.bf16.mxu0 0
    %297 = vmatpush1.bf16.msra.mxu0 0
    %298 = vmatprep.subr.bf16.mxu0 0
    %299 = vmatpush1.bf16.msra.mxu0 0
    %300 = vmatprep.subr.bf16.mxu0 0
    %301 = vmatpush1.bf16.msra.mxu0 0
    %302 = vmatprep.subr.bf16.mxu0 0
    %303 = vmatpush1.bf16.msra.mxu0 0
    %304 = vmatprep.subr.bf16.mxu0 0
    %305 = vmatpush1.bf16.msra.mxu0 0
    %306 = vmatprep.mubr.bf16.mxu0 0
    %307 = vmatmul.mubr.bf16.gmra.mrb[0].mxu0 %v110
    %v308 = vpop.f32.mrb[0].mxu0
    %v309 = vadd.f32 %v41, %v308
    %v310 = vpop.f32.mrb[0].mxu0
    %v311 = vadd.f32 %v41, %v310
    %v312 = vpop.f32.mrb[0].mxu0
    %v313 = vadd.f32 %v46, %v312
    %v314 = vpop.f32.mrb[0].mxu0
    %v315 = vadd.f32 %v46, %v314
    %316 = vmatprep.mubr.bf16.mxu0 0
    %317 = vmatmul.mubr.bf16.gmra.mrb[0].mxu0 %v113
    %v318 = vpop.f32.mrb[0].mxu0
    %v319 = vadd.f32 %v51, %v318
    %v320 = vpop.f32.mrb[0].mxu0
    %v321 = vadd.f32 %v51, %v320
    %v322 = vpop.f32.mrb[0].mxu0
    %v323 = vadd.f32 %v56, %v322
    %v324 = vpop.f32.mrb[0].mxu0
    %v325 = vadd.f32 %v56, %v324
    %326 = vdwg.mxu0
    %v327 = vmax.f32 %v150, 0.0
    %v328 = vmax.f32 %v152, 0.0
    %v329 = vmax.f32 %v203, 0.0
    %v330 = vmax.f32 %v205, 0.0
    %v331 = vmax.f32 %v256, 0.0
    %v332 = vmax.f32 %v258, 0.0
    %v333 = vmax.f32 %v309, 0.0
    %v334 = vmax.f32 %v311, 0.0
    %v335 = vmax.f32 %v154, 0.0
    %v336 = vmax.f32 %v156, 0.0
    %v337 = vmax.f32 %v207, 0.0
    %v338 = vmax.f32 %v209, 0.0
    %v339 = vmax.f32 %v260, 0.0
    %v340 = vmax.f32 %v262, 0.0
    %v341 = vmax.f32 %v313, 0.0
    %v342 = vmax.f32 %v315, 0.0
    %v343 = vmax.f32 %v160, 0.0
    %v344 = vmax.f32 %v162, 0.0
    %v345 = vmax.f32 %v213, 0.0
    %v346 = vmax.f32 %v215, 0.0
    %v347 = vmax.f32 %v266, 0.0
    %v348 = vmax.f32 %v268, 0.0
    %v349 = vmax.f32 %v319, 0.0
    %v350 = vmax.f32 %v321, 0.0
    %v351 = vmax.f32 %v164, 0.0
    %v352 = vmax.f32 %v166, 0.0
    %v353 = vmax.f32 %v217, 0.0
    %v354 = vmax.f32 %v219, 0.0
    %v355 = vmax.f32 %v270, 0.0
    %v356 = vmax.f32 %v272, 0.0
    %v357 = vmax.f32 %v323, 0.0
    %v358 = vmax.f32 %v325, 0.0
    %v359 = vld [vmem:[%s3] sm:$0xf]
    %v360 = vpack.c.bf16 %v335, %v327
    %v361 = vpack.c.bf16 %v336, %v328
    %v362 = vpack.c.bf16 %v337, %v329
    %v363 = vpack.c.bf16 %v338, %v330
    %v364 = vpack.c.bf16 %v339, %v331
    %v365 = vpack.c.bf16 %v340, %v332
    %v366 = vpack.c.bf16 %v341, %v333
    %v367 = vpack.c.bf16 %v342, %v334
    %v368 = vpack.c.bf16 %v351, %v343
    %v369 = vpack.c.bf16 %v352, %v344
    %v370 = vpack.c.bf16 %v353, %v345
    %v371 = vpack.c.bf16 %v354, %v346
    %v372 = vpack.c.bf16 %v355, %v347
    %v373 = vpack.c.bf16 %v356, %v348
    %v374 = vpack.c.bf16 %v357, %v349
    %v375 = vpack.c.bf16 %v358, %v350
    %v376 = vld [vmem:[%s4] sm:$0xff]
    %378 = vset.pattern.permute.xlu0 0
    %379 = vperm.xlu0 %378, %v376
    %v380 = vpop.permute.xlu0 %379
    %vm382 = vcmask 261120
    %v384 = vsel %vm382, %v359, 0
    %386 = vmatprep.subr.bf16.mxu0 %v361
    %387 = vmatpush1.bf16.msra.mxu0 %v360
    %388 = vmatprep.subr.bf16.mxu0 %v369
    %389 = vmatpush1.bf16.msra.mxu0 %v368
    %390 = vmatprep.subr.bf16.mxu0 0
    %391 = vmatpush1.bf16.msra.mxu0 0
    %392 = vmatprep.subr.bf16.mxu0 0
    %393 = vmatpush1.bf16.msra.mxu0 0
    %394 = vmatprep.subr.bf16.mxu0 0
    %395 = vmatpush1.bf16.msra.mxu0 0
    %396 = vmatprep.subr.bf16.mxu0 0
    %397 = vmatpush1.bf16.msra.mxu0 0
    %398 = vmatprep.subr.bf16.mxu0 0
    %399 = vmatpush1.bf16.msra.mxu0 0
    %400 = vmatprep.subr.bf16.mxu0 0
    %401 = vmatpush1.bf16.msra.mxu0 0
    %402 = vmatprep.subr.bf16.mxu0 0
    %403 = vmatpush1.bf16.msra.mxu0 0
    %404 = vmatprep.subr.bf16.mxu0 0
    %405 = vmatpush1.bf16.msra.mxu0 0
    %406 = vmatprep.subr.bf16.mxu0 0
    %407 = vmatpush1.bf16.msra.mxu0 0
    %408 = vmatprep.subr.bf16.mxu0 0
    %409 = vmatpush1.bf16.msra.mxu0 0
    %410 = vmatprep.subr.bf16.mxu0 0
    %411 = vmatpush1.bf16.msra.mxu0 0
    %412 = vmatprep.subr.bf16.mxu0 0
    %413 = vmatpush1.bf16.msra.mxu0 0
    %414 = vmatprep.subr.bf16.mxu0 0
    %415 = vmatpush1.bf16.msra.mxu0 0
    %416 = vmatprep.subr.bf16.mxu0 0
    %417 = vmatpush1.bf16.msra.mxu0 0
    %418 = vmatprep.mubr.bf16.mxu0 0
    %419 = vmatmul.mubr.bf16.gmra.mrb[0].mxu0 %v384
    %v420 = vpop.f32.mrb[0].mxu0
    %v421 = vadd.f32 %v380, %v420
    %v422 = vpop.f32.mrb[0].mxu0
    %v423 = vadd.f32 %v380, %v422
    %v424 = vpop.f32.mrb[0].mxu0
    %v425 = vpop.f32.mrb[0].mxu0
    %426 = vdwg.mxu0
    %427 = vmatprep.subr.bf16.mxu0 %v363
    %428 = vmatpush1.bf16.msra.mxu0 %v362
    %429 = vmatprep.subr.bf16.mxu0 %v371
    %430 = vmatpush1.bf16.msra.mxu0 %v370
    %431 = vmatprep.subr.bf16.mxu0 0
    %432 = vmatpush1.bf16.msra.mxu0 0
    %433 = vmatprep.subr.bf16.mxu0 0
    %434 = vmatpush1.bf16.msra.mxu0 0
    %435 = vmatprep.subr.bf16.mxu0 0
    %436 = vmatpush1.bf16.msra.mxu0 0
    %437 = vmatprep.subr.bf16.mxu0 0
    %438 = vmatpush1.bf16.msra.mxu0 0
    %439 = vmatprep.subr.bf16.mxu0 0
    %440 = vmatpush1.bf16.msra.mxu0 0
    %441 = vmatprep.subr.bf16.mxu0 0
    %442 = vmatpush1.bf16.msra.mxu0 0
    %443 = vmatprep.subr.bf16.mxu0 0
    %444 = vmatpush1.bf16.msra.mxu0 0
    %445 = vmatprep.subr.bf16.mxu0 0
    %446 = vmatpush1.bf16.msra.mxu0 0
    %447 = vmatprep.subr.bf16.mxu0 0
    %448 = vmatpush1.bf16.msra.mxu0 0
    %449 = vmatprep.subr.bf16.mxu0 0
    %450 = vmatpush1.bf16.msra.mxu0 0
    %451 = vmatprep.subr.bf16.mxu0 0
    %452 = vmatpush1.bf16.msra.mxu0 0
    %453 = vmatprep.subr.bf16.mxu0 0
    %454 = vmatpush1.bf16.msra.mxu0 0
    %455 = vmatprep.subr.bf16.mxu0 0
    %456 = vmatpush1.bf16.msra.mxu0 0
    %457 = vmatprep.subr.bf16.mxu0 0
    %458 = vmatpush1.bf16.msra.mxu0 0
    %459 = vmatprep.mubr.bf16.mxu0 0
    %460 = vmatmul.mubr.bf16.gmra.mrb[0].mxu0 %v384
    %v461 = vpop.f32.mrb[0].mxu0
    %v462 = vadd.f32 %v380, %v461
    %v463 = vpop.f32.mrb[0].mxu0
    %v464 = vadd.f32 %v380, %v463
    %v465 = vpop.f32.mrb[0].mxu0
    %v466 = vpop.f32.mrb[0].mxu0
    %467 = vdwg.mxu0
    %468 = vmatprep.subr.bf16.mxu0 %v365
    %469 = vmatpush1.bf16.msra.mxu0 %v364
    %470 = vmatprep.subr.bf16.mxu0 %v373
    %471 = vmatpush1.bf16.msra.mxu0 %v372
    %472 = vmatprep.subr.bf16.mxu0 0
    %473 = vmatpush1.bf16.msra.mxu0 0
    %474 = vmatprep.subr.bf16.mxu0 0
    %475 = vmatpush1.bf16.msra.mxu0 0
    %476 = vmatprep.subr.bf16.mxu0 0
    %477 = vmatpush1.bf16.msra.mxu0 0
    %478 = vmatprep.subr.bf16.mxu0 0
    %479 = vmatpush1.bf16.msra.mxu0 0
    %480 = vmatprep.subr.bf16.mxu0 0
    %481 = vmatpush1.bf16.msra.mxu0 0
    %482 = vmatprep.subr.bf16.mxu0 0
    %483 = vmatpush1.bf16.msra.mxu0 0
    %484 = vmatprep.subr.bf16.mxu0 0
    %485 = vmatpush1.bf16.msra.mxu0 0
    %486 = vmatprep.subr.bf16.mxu0 0
    %487 = vmatpush1.bf16.msra.mxu0 0
    %488 = vmatprep.subr.bf16.mxu0 0
    %489 = vmatpush1.bf16.msra.mxu0 0
    %490 = vmatprep.subr.bf16.mxu0 0
    %491 = vmatpush1.bf16.msra.mxu0 0
    %492 = vmatprep.subr.bf16.mxu0 0
    %493 = vmatpush1.bf16.msra.mxu0 0
    %494 = vmatprep.subr.bf16.mxu0 0
    %495 = vmatpush1.bf16.msra.mxu0 0
    %496 = vmatprep.subr.bf16.mxu0 0
    %497 = vmatpush1.bf16.msra.mxu0 0
    %498 = vmatprep.subr.bf16.mxu0 0
    %499 = vmatpush1.bf16.msra.mxu0 0
    %500 = vmatprep.mubr.bf16.mxu0 0
    %501 = vmatmul.mubr.bf16.gmra.mrb[0].mxu0 %v384
    %v502 = vpop.f32.mrb[0].mxu0
    %v503 = vadd.f32 %v380, %v502
    %v504 = vpop.f32.mrb[0].mxu0
    %v505 = vadd.f32 %v380, %v504
    %v506 = vpop.f32.mrb[0].mxu0
    %v507 = vpop.f32.mrb[0].mxu0
    %508 = vdwg.mxu0
    %509 = vmatprep.subr.bf16.mxu0 %v367
    %510 = vmatpush1.bf16.msra.mxu0 %v366
    %511 = vmatprep.subr.bf16.mxu0 %v375
    %512 = vmatpush1.bf16.msra.mxu0 %v374
    %513 = vmatprep.subr.bf16.mxu0 0
    %514 = vmatpush1.bf16.msra.mxu0 0
    %515 = vmatprep.subr.bf16.mxu0 0
    %516 = vmatpush1.bf16.msra.mxu0 0
    %517 = vmatprep.subr.bf16.mxu0 0
    %518 = vmatpush1.bf16.msra.mxu0 0
    %519 = vmatprep.subr.bf16.mxu0 0
    %520 = vmatpush1.bf16.msra.mxu0 0
    %521 = vmatprep.subr.bf16.mxu0 0
    %522 = vmatpush1.bf16.msra.mxu0 0
    %523 = vmatprep.subr.bf16.mxu0 0
    %524 = vmatpush1.bf16.msra.mxu0 0
    %525 = vmatprep.subr.bf16.mxu0 0
    %526 = vmatpush1.bf16.msra.mxu0 0
    %527 = vmatprep.subr.bf16.mxu0 0
    %528 = vmatpush1.bf16.msra.mxu0 0
    %529 = vmatprep.subr.bf16.mxu0 0
    %530 = vmatpush1.bf16.msra.mxu0 0
    %531 = vmatprep.subr.bf16.mxu0 0
    %532 = vmatpush1.bf16.msra.mxu0 0
    %533 = vmatprep.subr.bf16.mxu0 0
    %534 = vmatpush1.bf16.msra.mxu0 0
    %535 = vmatprep.subr.bf16.mxu0 0
    %536 = vmatpush1.bf16.msra.mxu0 0
    %537 = vmatprep.subr.bf16.mxu0 0
    %538 = vmatpush1.bf16.msra.mxu0 0
    %539 = vmatprep.subr.bf16.mxu0 0
    %540 = vmatpush1.bf16.msra.mxu0 0
    %541 = vmatprep.mubr.bf16.mxu0 0
    %542 = vmatmul.mubr.bf16.gmra.mrb[0].mxu0 %v384
    %v543 = vpop.f32.mrb[0].mxu0
    %v544 = vadd.f32 %v380, %v543
    %v545 = vpop.f32.mrb[0].mxu0
    %v546 = vadd.f32 %v380, %v545
    %v547 = vpop.f32.mrb[0].mxu0
    %v548 = vpop.f32.mrb[0].mxu0
    %549 = vdwg.mxu0
    %v550 = vrot.slane %v421, 4
    %v551 = vmax.f32 %v421, %v550
    %v552 = vrot.slane %v551, 2
    %v553 = vmax.f32 %v551, %v552
    %v554 = vrot.slane %v553, 1
    %v555 = vmax.f32 %v553, %v554
    %v556 = vrot.slane %v423, 4
    %v557 = vmax.f32 %v423, %v556
    %v558 = vrot.slane %v557, 2
    %v559 = vmax.f32 %v557, %v558
    %v560 = vrot.slane %v559, 1
    %v561 = vmax.f32 %v559, %v560
    %v562 = vrot.slane %v462, 4
    %v563 = vmax.f32 %v462, %v562
    %v564 = vrot.slane %v563, 2
    %v565 = vmax.f32 %v563, %v564
    %v566 = vrot.slane %v565, 1
    %v567 = vmax.f32 %v565, %v566
    %v568 = vrot.slane %v464, 4
    %v569 = vmax.f32 %v464, %v568
    %v570 = vrot.slane %v569, 2
    %v571 = vmax.f32 %v569, %v570
    %v572 = vrot.slane %v571, 1
    %v573 = vmax.f32 %v571, %v572
    %v574 = vrot.slane %v503, 4
    %v575 = vmax.f32 %v503, %v574
    %v576 = vrot.slane %v575, 2
    %v577 = vmax.f32 %v575, %v576
    %v578 = vrot.slane %v577, 1
    %v579 = vmax.f32 %v577, %v578
    %v580 = vrot.slane %v505, 4
    %v581 = vmax.f32 %v505, %v580
    %v582 = vrot.slane %v581, 2
    %v583 = vmax.f32 %v581, %v582
    %v584 = vrot.slane %v583, 1
    %v585 = vmax.f32 %v583, %v584
    %v586 = vrot.slane %v544, 4
    %v587 = vmax.f32 %v544, %v586
    %v588 = vrot.slane %v587, 2
    %v589 = vmax.f32 %v587, %v588
    %v590 = vrot.slane %v589, 1
    %v591 = vmax.f32 %v589, %v590
    %v592 = vrot.slane %v546, 4
    %v593 = vmax.f32 %v546, %v592
    %v594 = vrot.slane %v593, 2
    %v595 = vmax.f32 %v593, %v594
    %v596 = vrot.slane %v595, 1
    %v597 = vmax.f32 %v595, %v596
    %v598 = vsub.f32 %v421, %v555
    %v599 = vsub.f32 %v423, %v561
    %v600 = vsub.f32 %v462, %v567
    %v601 = vsub.f32 %v464, %v573
    %v602 = vsub.f32 %v503, %v579
    %v603 = vsub.f32 %v505, %v585
    %v604 = vsub.f32 %v544, %v591
    %v605 = vsub.f32 %v546, %v597
    %v606 = vmul.f32 %v598, 1.442695
    %v607 = vpow.pop %v606
    %v608 = vmul.f32 %v599, 1.442695
    %v609 = vpow.pop %v608
    %v610 = vmul.f32 %v600, 1.442695
    %v611 = vpow.pop %v610
    %v612 = vmul.f32 %v601, 1.442695
    %v613 = vpow.pop %v612
    %v614 = vmul.f32 %v602, 1.442695
    %v615 = vpow.pop %v614
    %v616 = vmul.f32 %v603, 1.442695
    %v617 = vpow.pop %v616
    %v618 = vmul.f32 %v604, 1.442695
    %v619 = vpow.pop %v618
    %v620 = vmul.f32 %v605, 1.442695
    %v621 = vpow.pop %v620
    %v622 = vrot.slane %v607, 4
    %v623 = vadd.f32 %v607, %v622
    %v624 = vrot.slane %v623, 2
    %v625 = vadd.f32 %v623, %v624
    %v626 = vrot.slane %v625, 1
    %v627 = vadd.f32 %v625, %v626
    %v628 = vrot.slane %v609, 4
    %v629 = vadd.f32 %v609, %v628
    %v630 = vrot.slane %v629, 2
    %v631 = vadd.f32 %v629, %v630
    %v632 = vrot.slane %v631, 1
    %v633 = vadd.f32 %v631, %v632
    %v634 = vrot.slane %v611, 4
    %v635 = vadd.f32 %v611, %v634
    %v636 = vrot.slane %v635, 2
    %v637 = vadd.f32 %v635, %v636
    %v638 = vrot.slane %v637, 1
    %v639 = vadd.f32 %v637, %v638
    %v640 = vrot.slane %v613, 4
    %v641 = vadd.f32 %v613, %v640
    %v642 = vrot.slane %v641, 2
    %v643 = vadd.f32 %v641, %v642
    %v644 = vrot.slane %v643, 1
    %v645 = vadd.f32 %v643, %v644
    %v646 = vrot.slane %v615, 4
    %v647 = vadd.f32 %v615, %v646
    %v648 = vrot.slane %v647, 2
    %v649 = vadd.f32 %v647, %v648
    %v650 = vrot.slane %v649, 1
    %v651 = vadd.f32 %v649, %v650
    %v652 = vrot.slane %v617, 4
    %v653 = vadd.f32 %v617, %v652
    %v654 = vrot.slane %v653, 2
    %v655 = vadd.f32 %v653, %v654
    %v656 = vrot.slane %v655, 1
    %v657 = vadd.f32 %v655, %v656
    %v658 = vrot.slane %v619, 4
    %v659 = vadd.f32 %v619, %v658
    %v660 = vrot.slane %v659, 2
    %v661 = vadd.f32 %v659, %v660
    %v662 = vrot.slane %v661, 1
    %v663 = vadd.f32 %v661, %v662
    %v664 = vrot.slane %v621, 4
    %v665 = vadd.f32 %v621, %v664
    %v666 = vrot.slane %v665, 2
    %v667 = vadd.f32 %v665, %v666
    %v668 = vrot.slane %v667, 1
    %v669 = vadd.f32 %v667, %v668
    %v670 = vlog2.pop %v627
    %v671 = vmul.f32 %v670, 0.6931472
    %v672 = vlog2.pop %v633
    %v673 = vmul.f32 %v672, 0.6931472
    %v674 = vlog2.pop %v639
    %v675 = vmul.f32 %v674, 0.6931472
    %v676 = vlog2.pop %v645
    %v677 = vmul.f32 %v676, 0.6931472
    %v678 = vlog2.pop %v651
    %v679 = vmul.f32 %v678, 0.6931472
    %v680 = vlog2.pop %v657
    %v681 = vmul.f32 %v680, 0.6931472
    %v682 = vlog2.pop %v663
    %v683 = vmul.f32 %v682, 0.6931472
    %v684 = vlog2.pop %v669
    %v685 = vmul.f32 %v684, 0.6931472
    %v686 = vsub.f32 %v598, %v671
    %v687 = vsub.f32 %v599, %v673
    %v688 = vsub.f32 %v600, %v675
    %v689 = vsub.f32 %v601, %v677
    %v690 = vsub.f32 %v602, %v679
    %v691 = vsub.f32 %v603, %v681
    %v692 = vsub.f32 %v604, %v683
    %v693 = vsub.f32 %v605, %v685
    %694 = vst [vmem:[#allocation2] sm:$0xff] %v686
    %695 = vst [vmem:[#allocation2 + $0x8] sm:$0xff] %v687
    %696 = vst [vmem:[#allocation2 + $0x10] sm:$0xff] %v688
    %697 = vst [vmem:[#allocation2 + $0x18] sm:$0xff] %v689
    %698 = vst [vmem:[#allocation2 + $0x20] sm:$0xff] %v690
    %699 = vst [vmem:[#allocation2 + $0x28] sm:$0xff] %v691
    %700 = vst [vmem:[#allocation2 + $0x30] sm:$0xff] %v692
    %701 = vst [vmem:[#allocation2 + $0x38] sm:$0xff] %v693
    // Predicated region
    $region22: #{tpu_custom_call.1} parent=1 // pred_check
      _
    $region23: #{tpu_custom_call.1} parent=1 // pred_check_branch
      %703 = sbr.rel (0) target = $region25
    $region24: #{tpu_custom_call.1} parent=1 // pred_region
      %s705 = ssub.s32 1024, 1024
      %706 = vsyncadd [#allocation3], %s705
      %s708 = sshll.u32 [#allocation2], 4
      %s709 = int_to_ptr.vmem [resolvable:$true] %s708
      %711 = dma.vmem_to_hbm [thread:$0]  %s709, 1024, %s5, [#allocation3]
    $region25: #{tpu_custom_call.1} parent=1 // pred_fallthru
      _
    // Predicated region
    $region26: #{tpu_custom_call.1} parent=1 // pred_check
      _
    $region27: #{tpu_custom_call.1} parent=1 // pred_check_branch
      %713 = sbr.rel (0) target = $region29
    $region28: #{tpu_custom_call.1} parent=1 // pred_region
      %714 = dma.done [#allocation3], 1024
    $region29: #{tpu_custom_call.1} parent=1 // pred_fallthru
      _
    %715 = vsyncpa [#allocation3], 1

</llo_original>
